<compile_context>
chip_gen: v6e
topology: v6e:2x2x1
jax: 0.10.0
libtpu: 0.0.40
codegen_flags: <defaults>
</compile_context>

<pallas_src>
import functools
import math

import jax
import jax.numpy as jnp
from jax.experimental import pallas as pl
from jax.experimental.pallas import tpu as pltpu


def _round_up(x, m):
    return (x + m - 1) // m * m


def _convnorm_kernel(x_ref, w_ref, b_ref, o_ref, *, precision):
    # One (batch, T-tile, C_out-tile) grid step: a single MXU matmul + bias add.
    #   x_ref: (CK_pad, TT)    im2col input tile (contraction = C_in*K, padded)
    #   w_ref: (TCO, CK_pad)   weight tile, contraction on last axis
    #   b_ref: (TCO, 1)        bias tile (f32)
    #   o_ref: (TCO, TT)       output tile (TT is a multiple of 128)
    acc = jnp.dot(w_ref[...], x_ref[...],
                  preferred_element_type=jnp.float32, precision=precision)
    acc = acc + b_ref[...]              # f32 bias add (keeps PyTorch numerics)
    o_ref[...] = acc.astype(o_ref.dtype)


def conv_norm_forward(x, weight, bias, *, stride=1, padding=None, dilation=1,
                      compute_dtype=jnp.bfloat16, out_dtype=None):
    """Pallas implementation of ConvNorm.forward (Conv1d, NCW)."""
    B, C_in, T = x.shape
    C_out, C_in_w, K = weight.shape
    assert C_in_w == C_in
    if padding is None:
        assert K % 2 == 1
        padding = int(dilation * (K - 1) / 2)
    if out_dtype is None:
        out_dtype = x.dtype

    # ---- glue: zero-pad the time axis (Conv1d's implicit padding) ----
    x_pad = jnp.pad(x, ((0, 0), (0, 0), (padding, padding)))
    T_pad = T + 2 * padding
    T_out = (T_pad - dilation * (K - 1) - 1) // stride + 1

    # ---- glue: im2col -- fold the K taps into the contraction dimension ----
    span = (T_out - 1) * stride + 1
    taps = []
    for k in range(K):
        start = k * dilation
        taps.append(
            jax.lax.slice(x_pad, (0, 0, start), (B, C_in, start + span),
                          (1, 1, stride)))            # (B, C_in, T_out)
    x_col = jnp.stack(taps, axis=2)                    # (B, C_in, K, T_out)
    x_col = x_col.reshape(B, C_in * K, T_out)          # (B, C_in*K, T_out)
    w2 = weight.reshape(C_out, C_in * K)               # matching (c, k) ordering

    # ---- tiling / alignment ----
    CK = C_in * K
    sub = 16 if jnp.dtype(compute_dtype).itemsize == 2 else 8
    CK_pad = _round_up(CK, sub)        # sublane-quantum padding only (not 128)

    if T_out <= 1024:
        TT = _round_up(T_out, 128)     # single lane-dense t step
    else:
        TT = 512
    T_out_pad = _round_up(T_out, TT)

    if C_out <= 256:
        TCO = _round_up(C_out, 8)      # single C_out tile
    else:
        n_co = -(-C_out // 256)        # tiles of <=256, minimizing padded rows
        TCO = _round_up(-(-C_out // n_co), 8)
    C_out_pad = _round_up(C_out, TCO)

    # Zero-pad operands to the aligned sizes (zeros in the contraction are exact).
    x_col = jnp.pad(x_col, ((0, 0), (0, CK_pad - CK), (0, T_out_pad - T_out)))
    x_col = x_col.astype(compute_dtype)
    w2 = jnp.pad(w2, ((0, C_out_pad - C_out), (0, CK_pad - CK)))
    w2 = w2.astype(compute_dtype)
    bias2d = jnp.pad(bias.astype(jnp.float32), (0, C_out_pad - C_out))
    bias2d = bias2d.reshape(C_out_pad, 1)

    # co innermost: x_col tile stays VMEM-resident across the C_out sweep.
    grid = (B, T_out_pad // TT, C_out_pad // TCO)

    precision = (jax.lax.Precision.HIGHEST
                 if jnp.dtype(compute_dtype) == jnp.dtype(jnp.float32)
                 else jax.lax.Precision.DEFAULT)

    out = pl.pallas_call(
        functools.partial(_convnorm_kernel, precision=precision),
        out_shape=jax.ShapeDtypeStruct((B, C_out_pad, T_out_pad), out_dtype),
        grid_spec=pltpu.PrefetchScalarGridSpec(
            num_scalar_prefetch=0,
            grid=grid,
            in_specs=[
                # streamed input tile: changes per t step, constant over co
                pl.BlockSpec((None, CK_pad, TT), lambda b, t, co: (b, 0, t)),
                # small weight/bias tiles: stream per co step
                pl.BlockSpec((TCO, CK_pad), lambda b, t, co: (co, 0)),
                pl.BlockSpec((TCO, 1), lambda b, t, co: (co, 0)),
            ],
            out_specs=pl.BlockSpec((None, TCO, TT), lambda b, t, co: (b, co, t)),
        ),
        compiler_params=pltpu.CompilerParams(
            # all axes independent (contraction lives inside one block)
            dimension_semantics=("parallel", "parallel", "parallel"),
            vmem_limit_bytes=32 * 1024 * 1024,
        ),
    )(x_col, w2, bias2d)

    return out[:, :C_out, :T_out]


def init_convnorm_params(key, in_channels, out_channels, kernel_size,
                         w_init_gain="linear"):
    """Deterministic parameter init matching the PyTorch module's __init__."""
    kw, kb = jax.random.split(key)
    fan_in = in_channels * kernel_size
    fan_out = out_channels * kernel_size
    gain = 1.0  # calculate_gain('linear') == 1.0
    bound_w = gain * math.sqrt(6.0 / (fan_in + fan_out))  # xavier_uniform_
    weight = jax.random.uniform(
        kw, (out_channels, in_channels, kernel_size),
        minval=-bound_w, maxval=bound_w, dtype=jnp.float32)
    # PyTorch Conv1d default bias init: U(-1/sqrt(fan_in), 1/sqrt(fan_in))
    bound_b = 1.0 / math.sqrt(fan_in)
    bias = jax.random.uniform(
        kb, (out_channels,), minval=-bound_b, maxval=bound_b, dtype=jnp.float32)
    return weight, bias


def _reference_conv1d(x, weight, bias, *, stride, padding, dilation):
    out = jax.lax.conv_general_dilated(
        x, weight,
        window_strides=(stride,),
        padding=[(padding, padding)],
        rhs_dilation=(dilation,),
        dimension_numbers=("NCH", "OIH", "NCH"),
        precision=jax.lax.Precision.HIGHEST,
    )
    return out + bias[None, :, None]


if __name__ == "__main__":
    key = jax.random.PRNGKey(0)

    # --- test 1: small spec-like shapes, exact f32 compute, tight tolerance ---
    B, C_in, C_out, T = 2, 4, 8, 16
    K, stride, dilation = 3, 1, 1
    k1, k2, key = jax.random.split(key, 3)
    x = jax.random.normal(k1, (B, C_in, T), dtype=jnp.float32)
    weight, bias = init_convnorm_params(k2, C_in, C_out, K)

    out = conv_norm_forward(x, weight, bias, stride=stride, dilation=dilation,
                            compute_dtype=jnp.float32)
    out = jax.block_until_ready(out)
    pad = dilation * (K - 1) // 2
    ref = _reference_conv1d(x, weight, bias, stride=stride, padding=pad,
                            dilation=dilation)
    assert out.shape == ref.shape, (out.shape, ref.shape)
    assert jnp.allclose(out, ref, atol=1e-4, rtol=1e-4), \
        float(jnp.max(jnp.abs(out - ref)))

    # --- test 2: shapes exercising C_out/T tiling, stride>1, dilation>1, bf16 MXU ---
    B, C_in, C_out, T = 2, 16, 384, 600
    K, stride, dilation = 5, 2, 2
    k1, k2, key = jax.random.split(key, 3)
    x = jax.random.normal(k1, (B, C_in, T), dtype=jnp.float32)
    weight, bias = init_convnorm_params(k2, C_in, C_out, K)
    # Pre-round inputs to bf16 so the bf16-MXU kernel and the f32 reference see
    # identical operand values (bf16*bf16 products are exact in f32).
    x_r = x.astype(jnp.bfloat16).astype(jnp.float32)
    w_r = weight.astype(jnp.bfloat16).astype(jnp.float32)

    out = conv_norm_forward(x_r, w_r, bias, stride=stride, dilation=dilation,
                            compute_dtype=jnp.bfloat16)
    out = jax.block_until_ready(out)
    pad = dilation * (K - 1) // 2
    ref = _reference_conv1d(x_r, w_r, bias, stride=stride, padding=pad,
                            dilation=dilation)
    assert out.shape == ref.shape, (out.shape, ref.shape)
    assert jnp.allclose(out, ref, atol=1e-3, rtol=1e-3), \
        float(jnp.max(jnp.abs(out - ref)))

    print("KERNEL_OK")
</pallas_src>

<mosaic_0001>
module attributes {stable_mosaic.version = 11 : i64} {
  func.func @_convnorm_kernel(%arg0: i32, %arg1: i32, %arg2: i32, %arg3: memref<1x16x128xf32, #tpu.memory_space<vmem>>, %arg4: memref<8x16xf32, #tpu.memory_space<vmem>>, %arg5: memref<8x1xf32, #tpu.memory_space<vmem>>, %arg6: memref<1x8x128xf32, #tpu.memory_space<vmem>>) attributes {dimension_semantics = [#tpu.dimension_semantics<parallel>, #tpu.dimension_semantics<parallel>, #tpu.dimension_semantics<parallel>], iteration_bounds = array<i64: 2, 1, 1>, scalar_prefetch = 0 : i64, scratch_operands = 0 : i64, tpu.core_type = #tpu.core_type<tc>, window_params = [{transform_indices = @transform_0, window_bounds = array<i64: 1, 16, 128>}, {transform_indices = @transform_1, window_bounds = array<i64: 8, 16>}, {transform_indices = @transform_2, window_bounds = array<i64: 8, 1>}, {transform_indices = @transform_3, window_bounds = array<i64: 1, 8, 128>}]} {
    %c0 = arith.constant 0 : index
    %c0_0 = arith.constant 0 : index
    %0 = vector.load %arg4[%c0, %c0_0] : memref<8x16xf32, #tpu.memory_space<vmem>>, vector<8x16xf32>
    %c0_1 = arith.constant 0 : index
    %c0_2 = arith.constant 0 : index
    %c0_3 = arith.constant 0 : index
    %1 = vector.load %arg3[%c0_1, %c0_2, %c0_3] : memref<1x16x128xf32, #tpu.memory_space<vmem>>, vector<1x16x128xf32>
    %2 = vector.shape_cast %1 : vector<1x16x128xf32> to vector<16x128xf32>
    %cst = arith.constant dense<0.000000e+00> : vector<8x128xf32>
    %3 = tpu.matmul %0, %2, %cst {dimension_numbers = #tpu.dot_dimension_numbers<[1], [0], [0], [1], [0, 0, 1, 1], [], []>, precision = #tpu.contract_precision<fp32>} : vector<8x16xf32>, vector<16x128xf32>, vector<8x128xf32> -> vector<8x128xf32>
    %c0_4 = arith.constant 0 : index
    %c0_5 = arith.constant 0 : index
    %4 = vector.load %arg5[%c0_4, %c0_5] : memref<8x1xf32, #tpu.memory_space<vmem>>, vector<8x1xf32>
    %5 = vector.broadcast %4 : vector<8x1xf32> to vector<8x128xf32>
    %6 = arith.addf %3, %5 : vector<8x128xf32>
    %c0_6 = arith.constant 0 : index
    %c0_7 = arith.constant 0 : index
    %c0_8 = arith.constant 0 : index
    %7 = vector.load %arg6[%c0_6, %c0_7, %c0_8] : memref<1x8x128xf32, #tpu.memory_space<vmem>>, vector<1x8x128xf32>
    %8 = vector.shape_cast %7 : vector<1x8x128xf32> to vector<8x128xf32>
    %9 = vector.shape_cast %6 : vector<8x128xf32> to vector<1x8x128xf32>
    tpu.vector_store %arg6[%c0_6, %c0_7, %c0_8], %9 {strides = array<i32>} : memref<1x8x128xf32, #tpu.memory_space<vmem>>, vector<1x8x128xf32>,
    return
  }
  func.func @transform_0(%arg0: i32, %arg1: i32, %arg2: i32) -> (i32, i32, i32) {
    %c0_i32 = arith.constant 0 : i32
    %c0_i32_0 = arith.constant 0 : i32
    return %arg0, %c0_i32, %arg1 : i32, i32, i32
  }
  func.func @transform_1(%arg0: i32, %arg1: i32, %arg2: i32) -> (i32, i32) {
    %c0_i32 = arith.constant 0 : i32
    %c0_i32_0 = arith.constant 0 : i32
    return %arg2, %c0_i32 : i32, i32
  }
  func.func @transform_2(%arg0: i32, %arg1: i32, %arg2: i32) -> (i32, i32) {
    %c0_i32 = arith.constant 0 : i32
    %c0_i32_0 = arith.constant 0 : i32
    return %arg2, %c0_i32 : i32, i32
  }
  func.func @transform_3(%arg0: i32, %arg1: i32, %arg2: i32) -> (i32, i32, i32) {
    %c0_i32 = arith.constant 0 : i32
    return %arg0, %arg2, %arg1 : i32, i32, i32
  }
}

</mosaic_0001>

<llo_original>
// kernel: tpu_custom_call.1
$region0: #{tpu_custom_call.1}
  #allocation0 [shape = 'u32[]', space=smem, size = 0x4, offset = 0x4, fixed_abs, tag = 'smem constant byte address 0x4 - core index']
  #allocation1 [shape = 'u32[144,128]{1,0:T(1,128)}', space=vmem, size = 0x12000, scoped, tag = 'internal scratch']
  %s0 = inlined_call_operand.hbm [shape: f32[2,16,128], index: 0, kind: input, shape index: {}]
  %s1 = inlined_call_operand.vmem [shape: f32[8,16], index: 1, kind: input, shape index: {}]
  %s2 = inlined_call_operand.vmem [shape: f32[8,1], index: 2, kind: input, shape index: {}]
  %s3 = inlined_call_operand.hbm [shape: f32[2,8,128], index: 3, kind: output, shape index: {}]
  %s4 = sld [smem:[#allocation0]]
  $region49: #{tpu_custom_call.1} parent=0
    _
  %s6 = ssub.s32 1, %s4
  %s7 = scalar_select 0, %s6, %s4
  $region1: #{tpu_custom_call.1} parent=0
    #allocation2 [shape = 'u8[16384]{0}', space=vmem, size = 0x4000, scoped, tag = 'input window, operand 0']
    #allocation3 [shape = 's32[2]{0}', space=sflag, size = 0x8, scoped, tag = 'scoped memory for tpu_custom_call.1']
    #allocation4 [shape = 's32[2]{0}', space=sflag, size = 0x8, scoped, tag = 'scoped memory for tpu_custom_call.1']
    #allocation5 [shape = 'u8[8192]{0}', space=vmem, size = 0x2000, scoped, tag = 'output window, operand 0']
    %8 = vsyncpa [#allocation3], 0
    %s9 = scalar_lea.sflag [#allocation3], 1
    %10 = vsyncpa %s9, 0
    %11 = vsyncpa [#allocation4], 0
    %s12 = scalar_lea.sflag [#allocation4], 1
    %13 = vsyncpa %s12, 0
    loop: start=0, step=1, limit=4
    $region2: #{tpu_custom_call.1} parent=1 // loop_pre_header
      _
    $region3: #{tpu_custom_call.1} parent=1 // loop_header
      %s15 = sphi 0, %s19
      %p16 = scmp.ge.s32.totalorder %s15, 4
      %s22 = sphi 0, %s41
      %s23 = sphi 0, %s37
      %s24 = sphi 0, %s33
      %s25 = sphi 0, %s22
      %s26 = sphi 0, %s23
      %s27 = sphi 0, %s24
      %s28 = sphi 0, %s25
      %s29 = sphi 0, %s26
      %s30 = sphi 0, %s27
      %s46 = sphi 0, %s48
      %s49 = sphi 0, %s46
      %s50 = sphi 0, %s49
      %s66 = sphi 0, %s50
      %s72 = sphi 0, %s74
      %s75 = sphi 0, %s72
      %s76 = sphi 0, %s75
      %s92 = sphi 0, %s76
      %s98 = sphi 0, %s100
      %s101 = sphi 0, %s98
      %s102 = sphi 0, %s101
      %s118 = sphi 0, %s102
      %s128 = sphi 0, %s130
      %s131 = sphi 0, %s128
      %s132 = sphi 0, %s131
      %s148 = sphi 0, %s132
    $region4: #{tpu_custom_call.1} parent=1 // loop_header_branch
      %18 = sbr.rel (%p16) target = $region8
    $region5: #{tpu_custom_call.1} parent=1 // loop_body
      %s20 = ssub.s32 %s15, 1
      %s21 = ssub.s32 %s15, 2
      %s31 = sadd.s32 1, %s24
      %p32 = scmp.ge.s32.totalorder %s31, 1
      %s33 = scalar_select %p32, 0, %s31
      %s34 = sadd.s32 1, %s23
      %s35 = scalar_select %p32, %s34, %s23
      %p36 = scmp.ge.s32.totalorder %s35, 1
      %s37 = scalar_select %p36, 0, %s35
      %s38 = sadd.s32 1, %s22
      %s39 = scalar_select %p36, %s38, %s22
      %p40 = scmp.ge.s32.totalorder %s39, 2
      %s41 = scalar_select %p40, 0, %s39
      %s42 = ssub.s32 %s22, %s41
      %s43 = ssub.s32 %s23, %s37
      %s44 = sor.u32 %s42, %s43
      %p45 = scmp.eq.s32.totalorder %s44, 0
      %s47 = sadd.s32 %s46, 1
      %s48 = scalar_select %p45, %s46, %s47
      %p51 = pneg %p45
      %p52 = scmp.eq.s32.totalorder %s15, 1
      %p53 = por %p51, %p52
      %p54 = scmp.ne.s32.totalorder %s46, %s49
      %p55 = scmp.eq.s32.totalorder %s15, 0
      %p56 = por %p54, %p55
      %p57 = scmp.ne.s32.totalorder %s46, %s49
      %p58 = scmp.eq.s32.totalorder %s20, 1
      %p59 = por %p57, %p58
      %p60 = scmp.ne.s32.totalorder %s49, %s50
      %p61 = scmp.eq.s32.totalorder %s20, 0
      %p62 = por %p60, %p61
      %p63 = scmp.ne.s32.totalorder %s49, %s50
      %p64 = scmp.eq.s32.totalorder %s21, 1
      %p65 = por %p63, %p64
      %p67 = scmp.ne.s32.totalorder %s50, %s66
      %p68 = scmp.eq.s32.totalorder %s21, 0
      %p69 = por %p67, %p68
      %s70 = ssub.s32 %s24, %s33
      %p71 = scmp.eq.s32.totalorder %s70, 0
      %s73 = sadd.s32 %s72, 1
      %s74 = scalar_select %p71, %s72, %s73
      %p77 = pneg %p71
      %p78 = scmp.eq.s32.totalorder %s15, 1
      %p79 = por %p77, %p78
      %p80 = scmp.ne.s32.totalorder %s72, %s75
      %p81 = scmp.eq.s32.totalorder %s15, 0
      %p82 = por %p80, %p81
      %p83 = scmp.ne.s32.totalorder %s72, %s75
      %p84 = scmp.eq.s32.totalorder %s20, 1
      %p85 = por %p83, %p84
      %p86 = scmp.ne.s32.totalorder %s75, %s76
      %p87 = scmp.eq.s32.totalorder %s20, 0
      %p88 = por %p86, %p87
      %p89 = scmp.ne.s32.totalorder %s75, %s76
      %p90 = scmp.eq.s32.totalorder %s21, 1
      %p91 = por %p89, %p90
      %p93 = scmp.ne.s32.totalorder %s76, %s92
      %p94 = scmp.eq.s32.totalorder %s21, 0
      %p95 = por %p93, %p94
      %s96 = ssub.s32 %s24, %s33
      %p97 = scmp.eq.s32.totalorder %s96, 0
      %s99 = sadd.s32 %s98, 1
      %s100 = scalar_select %p97, %s98, %s99
      %p103 = pneg %p97
      %p104 = scmp.eq.s32.totalorder %s15, 1
      %p105 = por %p103, %p104
      %p106 = scmp.ne.s32.totalorder %s98, %s101
      %p107 = scmp.eq.s32.totalorder %s15, 0
      %p108 = por %p106, %p107
      %p109 = scmp.ne.s32.totalorder %s98, %s101
      %p110 = scmp.eq.s32.totalorder %s20, 1
      %p111 = por %p109, %p110
      %p112 = scmp.ne.s32.totalorder %s101, %s102
      %p113 = scmp.eq.s32.totalorder %s20, 0
      %p114 = por %p112, %p113
      %p115 = scmp.ne.s32.totalorder %s101, %s102
      %p116 = scmp.eq.s32.totalorder %s21, 1
      %p117 = por %p115, %p116
      %p119 = scmp.ne.s32.totalorder %s102, %s118
      %p120 = scmp.eq.s32.totalorder %s21, 0
      %p121 = por %p119, %p120
      %s122 = ssub.s32 %s22, %s41
      %s123 = ssub.s32 %s24, %s33
      %s124 = sor.u32 %s122, %s123
      %s125 = ssub.s32 %s23, %s37
      %s126 = sor.u32 %s124, %s125
      %p127 = scmp.eq.s32.totalorder %s126, 0
      %s129 = sadd.s32 %s128, 1
      %s130 = scalar_select %p127, %s128, %s129
      %p133 = pneg %p127
      %p134 = scmp.eq.s32.totalorder %s15, 1
      %p135 = por %p133, %p134
      %p136 = scmp.ne.s32.totalorder %s128, %s131
      %p137 = scmp.eq.s32.totalorder %s15, 0
      %p138 = por %p136, %p137
      %p139 = scmp.ne.s32.totalorder %s128, %s131
      %p140 = scmp.eq.s32.totalorder %s20, 1
      %p141 = por %p139, %p140
      %p142 = scmp.ne.s32.totalorder %s131, %s132
      %p143 = scmp.eq.s32.totalorder %s20, 0
      %p144 = por %p142, %p143
      %p145 = scmp.ne.s32.totalorder %s131, %s132
      %p146 = scmp.eq.s32.totalorder %s21, 1
      %p147 = por %p145, %p146
      %p149 = scmp.ne.s32.totalorder %s132, %s148
      %p150 = scmp.eq.s32.totalorder %s21, 0
      %p151 = por %p149, %p150
      %p152 = scmp.le.s32.totalorder 1, %s15
      %p153 = scmp.lt.s32.totalorder %s15, 3
      %p154 = pnand %p152, %p153
      %p155 = pneg %p154
      // Predicated region
      $region9: #{tpu_custom_call.1} parent=5 // pred_check
        _
      $region10: #{tpu_custom_call.1} parent=5 // pred_check_branch
        %157 = sbr.rel (%p154) target = $region12
      $region11: #{tpu_custom_call.1} parent=5 // pred_region
        %s158 = ssub.s32 %s15, 1
        // Predicated region
        $region13: #{tpu_custom_call.1} parent=11 // pred_check
          %p159 = pneg %p88
        $region14: #{tpu_custom_call.1} parent=11 // pred_check_branch
          %161 = sbr.rel (%p159) target = $region16
        $region15: #{tpu_custom_call.1} parent=11 // pred_region
          %p162 = scmp.lt.s32.totalorder %s27, 0
          %s163 = scalar_select %p162, %s27, 0
          %s164 = smul.addr %s163, 8
          %s165 = scalar_lea.vmem %s1, %s164
        $region16: #{tpu_custom_call.1} parent=11 // pred_fallthru
          _
        // Predicated region
        $region17: #{tpu_custom_call.1} parent=11 // pred_check
          %p166 = pneg %p114
        $region18: #{tpu_custom_call.1} parent=11 // pred_check_branch
          %168 = sbr.rel (%p166) target = $region20
        $region19: #{tpu_custom_call.1} parent=11 // pred_region
          %p169 = scmp.lt.s32.totalorder %s27, 0
          %s170 = scalar_select %p169, %s27, 0
          %s171 = smul.addr %s170, 8
          %s172 = scalar_lea.vmem %s2, %s171
        $region20: #{tpu_custom_call.1} parent=11 // pred_fallthru
          _
      $region12: #{tpu_custom_call.1} parent=5 // pred_fallthru
        _
      %p173 = scmp.lt.s32.totalorder %s15, 2
      // Predicated region
      $region21: #{tpu_custom_call.1} parent=5 // pred_check
        %p174 = pneg %p173
      $region22: #{tpu_custom_call.1} parent=5 // pred_check_branch
        %176 = sbr.rel (%p174) target = $region24
      $region23: #{tpu_custom_call.1} parent=5 // pred_region
        // Predicated region
        $region25: #{tpu_custom_call.1} parent=23 // pred_check
          %p177 = pneg %p56
        $region26: #{tpu_custom_call.1} parent=23 // pred_check_branch
          %179 = sbr.rel (%p177) target = $region28
        $region27: #{tpu_custom_call.1} parent=23 // pred_region
          %s180 = sand.u32 %s46, 1
          %s181 = scalar_lea.sflag [#allocation3], %s180
          %s182 = sand.u32 %s46, 1
          %s183 = smul.addr %s182, 16
          %s184 = scalar_lea.vmem [#allocation2], %s183
          %s186 = ssub.s32 256, 256
          %187 = vsyncadd %s181, %s186
          %s188 = smul.addr %s22, 2
          %s189 = sadd.s32 %s23, %s188
          %s190 = smul.addr %s189, 128
          %s191 = scalar_lea.hbm %s0, %s190
          %s192 = sshll.u32 %s184, 4
          %s193 = int_to_ptr.vmem [resolvable:$true] %s192
          %198 = dma.hbm_to_vmem [thread:$0]  %s191, 256, %s193, %s181, 128, 128, 8
        $region28: #{tpu_custom_call.1} parent=23 // pred_fallthru
          _
      $region24: #{tpu_custom_call.1} parent=5 // pred_fallthru
        _
      %p199 = scmp.le.s32.totalorder 1, %s15
      %p200 = scmp.lt.s32.totalorder %s15, 3
      %p201 = pnand %p199, %p200
      %p202 = pneg %p201
      // Predicated region
      $region29: #{tpu_custom_call.1} parent=5 // pred_check
        _
      $region30: #{tpu_custom_call.1} parent=5 // pred_check_branch
        %204 = sbr.rel (%p201) target = $region32
      $region31: #{tpu_custom_call.1} parent=5 // pred_region
        %s205 = ssub.s32 %s15, 1
        %s206 = sand.u32 %s49, 1
        %s207 = scalar_lea.sflag [#allocation3], %s206
        %s208 = sand.u32 %s49, 1
        %s209 = smul.addr %s208, 16
        %s210 = scalar_lea.vmem [#allocation2], %s209
        // Predicated region
        $region33: #{tpu_custom_call.1} parent=31 // pred_check
          %p211 = pneg %p62
        $region34: #{tpu_custom_call.1} parent=31 // pred_check_branch
          %213 = sbr.rel (%p211) target = $region36
        $region35: #{tpu_custom_call.1} parent=31 // pred_region
          %214 = dma.done %s207, 256
        $region36: #{tpu_custom_call.1} parent=31 // pred_fallthru
          _
        %s215 = sand.u32 %s49, 1
        %s216 = scalar_lea.sflag [#allocation3], %s215
        %s217 = sand.u32 %s49, 1
        %s218 = smul.addr %s217, 16
        %s219 = scalar_lea.vmem [#allocation2], %s218
        %p220 = pneg %p62
        %p221 = pneg %p59
        %p222 = scmp.lt.s32.totalorder %s27, 0
        %s223 = scalar_select %p222, %s27, 0
        %s224 = smul.addr %s223, 8
        %s225 = scalar_lea.vmem %s1, %s224
        %p226 = pneg %p88
        %p227 = pneg %p85
        %p228 = scmp.lt.s32.totalorder %s27, 0
        %s229 = scalar_select %p228, %s27, 0
        %s230 = smul.addr %s229, 8
        %s231 = scalar_lea.vmem %s2, %s230
        %p232 = pneg %p114
        %p233 = pneg %p111
        %p234 = pneg %p144
        %p235 = pneg %p141
        %s236 = sand.u32 %s131, 1
        %s237 = scalar_lea.sflag [#allocation4], %s236
        %s238 = sand.u32 %s131, 1
        %s239 = smul.addr %s238, 8
        %s240 = scalar_lea.vmem [#allocation5], %s239
        %p241 = scmp.lt.s32.totalorder %s27, 0
        %s242 = scalar_select %p241, %s27, 0
        %s243 = smul.addr %s242, 8
        %s244 = scalar_lea.vmem %s1, %s243
        %p245 = scmp.lt.s32.totalorder %s27, 0
        %s246 = scalar_select %p245, %s27, 0
        %s247 = smul.addr %s246, 8
        %s248 = scalar_lea.vmem %s2, %s247
        %v249 = vld [vmem:[%s244] sm:$0xff]
        %v250 = vld [vmem:[%s210] sm:$0xff]
        %v251 = vld [vmem:[%s210 + $0x8] sm:$0xff]
        %v252 = vld [vmem:[%s248] sm:$0xff]
        %254 = vset.pattern.permute.xlu0 0
        %255 = vperm.xlu0 %254, %v252
        %v256 = vpop.permute.xlu0 %255
        %vm258 = vcmask 130048
        %v260 = vsel %vm258, %v249, 0
        %262 = vmatprep.subr.mxu0 0.0
        %263 = vmatpush1.msra.mxu0 0.0
        %264 = vmatprep.subr.mxu0 0.0
        %265 = vmatpush1.msra.mxu0 0.0
        %266 = vmatprep.subr.mxu0 0.0
        %267 = vmatpush1.msra.mxu0 0.0
        %268 = vmatprep.subr.mxu0 0.0
        %269 = vmatpush1.msra.mxu0 0.0
        %270 = vmatprep.subr.mxu0 0.0
        %271 = vmatpush1.msra.mxu0 0.0
        %272 = vmatprep.subr.mxu0 0.0
        %273 = vmatpush1.msra.mxu0 0.0
        %274 = vmatprep.subr.mxu0 0.0
        %275 = vmatpush1.msra.mxu0 0.0
        %276 = vmatprep.subr.mxu0 0.0
        %277 = vmatpush1.msra.mxu0 0.0
        %278 = vmatprep.subr.mxu0 0.0
        %279 = vmatpush1.msra.mxu0 0.0
        %280 = vmatprep.subr.mxu0 0.0
        %281 = vmatpush1.msra.mxu0 0.0
        %282 = vmatprep.subr.mxu0 0.0
        %283 = vmatpush1.msra.mxu0 0.0
        %284 = vmatprep.subr.mxu0 0.0
        %285 = vmatpush1.msra.mxu0 0.0
        %286 = vmatprep.subr.mxu0 0.0
        %287 = vmatpush1.msra.mxu0 0.0
        %288 = vmatprep.subr.mxu0 0.0
        %289 = vmatpush1.msra.mxu0 0.0
        %290 = vmatprep.subr.mxu0 0.0
        %v291 = vand.u32 %v251, 4294901760
        %292 = vmatpush1.msra.mxu0 %v291
        %293 = vmatprep.subr.mxu0 0.0
        %v294 = vand.u32 %v250, 4294901760
        %295 = vmatpush1.msra.mxu0 %v294
        %296 = vmatprep.subr.mxu0 0.0
        %297 = vmatpush2.msra.mxu0 0.0
        %298 = vmatprep.subr.mxu0 0.0
        %299 = vmatpush2.msra.mxu0 0.0
        %300 = vmatprep.subr.mxu0 0.0
        %301 = vmatpush2.msra.mxu0 0.0
        %302 = vmatprep.subr.mxu0 0.0
        %303 = vmatpush2.msra.mxu0 0.0
        %304 = vmatprep.subr.mxu0 0.0
        %305 = vmatpush2.msra.mxu0 0.0
        %306 = vmatprep.subr.mxu0 0.0
        %307 = vmatpush2.msra.mxu0 0.0
        %308 = vmatprep.subr.mxu0 0.0
        %309 = vmatpush2.msra.mxu0 0.0
        %310 = vmatprep.subr.mxu0 0.0
        %311 = vmatpush2.msra.mxu0 0.0
        %312 = vmatprep.subr.mxu0 0.0
        %313 = vmatpush2.msra.mxu0 0.0
        %314 = vmatprep.subr.mxu0 0.0
        %315 = vmatpush2.msra.mxu0 0.0
        %316 = vmatprep.subr.mxu0 0.0
        %317 = vmatpush2.msra.mxu0 0.0
        %318 = vmatprep.subr.mxu0 0.0
        %319 = vmatpush2.msra.mxu0 0.0
        %320 = vmatprep.subr.mxu0 0.0
        %321 = vmatpush2.msra.mxu0 0.0
        %322 = vmatprep.subr.mxu0 0.0
        %323 = vmatpush2.msra.mxu0 0.0
        %324 = vmatprep.subr.mxu0 0.0
        %325 = vmatpush2.msra.mxu0 0.0
        %326 = vmatprep.subr.mxu0 0.0
        %327 = vmatpush2.msra.mxu0 0.0
        %328 = vmatprep.mubr.f32.mxu0 0.0
        %v329 = vand.u32 %v260, 4294901760
        %v330 = vsub.f32 %v260, %v329
        %v331 = vand.u32 %v330, 4294901760
        %v332 = vsub.f32 %v330, %v331
        %v333 = vand.u32 %v332, 4294901760
        %334 = vmatmul.mubr.f32.gmra.mxu0 %v333
        %v335 = vpop.f32.mrf.mxu0
        %v336 = vadd.f32 %v256, %v335
        %v337 = vpop.f32.mrf.mxu0
        %338 = vdwg.mxu0
        %339 = vmatprep.subr.mxu0 0.0
        %340 = vmatpush1.msra.mxu0 0.0
        %341 = vmatprep.subr.mxu0 0.0
        %342 = vmatpush1.msra.mxu0 0.0
        %343 = vmatprep.subr.mxu0 0.0
        %344 = vmatpush1.msra.mxu0 0.0
        %345 = vmatprep.subr.mxu0 0.0
        %346 = vmatpush1.msra.mxu0 0.0
        %347 = vmatprep.subr.mxu0 0.0
        %348 = vmatpush1.msra.mxu0 0.0
        %349 = vmatprep.subr.mxu0 0.0
        %350 = vmatpush1.msra.mxu0 0.0
        %351 = vmatprep.subr.mxu0 0.0
        %352 = vmatpush1.msra.mxu0 0.0
        %353 = vmatprep.subr.mxu0 0.0
        %354 = vmatpush1.msra.mxu0 0.0
        %355 = vmatprep.subr.mxu0 0.0
        %356 = vmatpush1.msra.mxu0 0.0
        %357 = vmatprep.subr.mxu0 0.0
        %358 = vmatpush1.msra.mxu0 0.0
        %359 = vmatprep.subr.mxu0 0.0
        %360 = vmatpush1.msra.mxu0 0.0
        %361 = vmatprep.subr.mxu0 0.0
        %362 = vmatpush1.msra.mxu0 0.0
        %363 = vmatprep.subr.mxu0 0.0
        %364 = vmatpush1.msra.mxu0 0.0
        %365 = vmatprep.subr.mxu0 0.0
        %366 = vmatpush1.msra.mxu0 0.0
        %367 = vmatprep.subr.mxu0 0.0
        %v368 = vand.u32 %v251, 4294901760
        %v369 = vsub.f32 %v251, %v368
        %v370 = vand.u32 %v369, 4294901760
        %v371 = vsub.f32 %v369, %v370
        %v372 = vand.u32 %v371, 4294901760
        %373 = vmatpush1.msra.mxu0 %v372
        %374 = vmatprep.subr.mxu0 0.0
        %v375 = vand.u32 %v250, 4294901760
        %v376 = vsub.f32 %v250, %v375
        %v377 = vand.u32 %v376, 4294901760
        %v378 = vsub.f32 %v376, %v377
        %v379 = vand.u32 %v378, 4294901760
        %380 = vmatpush1.msra.mxu0 %v379
        %381 = vmatprep.subr.mxu0 0.0
        %382 = vmatpush2.msra.mxu0 0.0
        %383 = vmatprep.subr.mxu0 0.0
        %384 = vmatpush2.msra.mxu0 0.0
        %385 = vmatprep.subr.mxu0 0.0
        %386 = vmatpush2.msra.mxu0 0.0
        %387 = vmatprep.subr.mxu0 0.0
        %388 = vmatpush2.msra.mxu0 0.0
        %389 = vmatprep.subr.mxu0 0.0
        %390 = vmatpush2.msra.mxu0 0.0
        %391 = vmatprep.subr.mxu0 0.0
        %392 = vmatpush2.msra.mxu0 0.0
        %393 = vmatprep.subr.mxu0 0.0
        %394 = vmatpush2.msra.mxu0 0.0
        %395 = vmatprep.subr.mxu0 0.0
        %396 = vmatpush2.msra.mxu0 0.0
        %397 = vmatprep.subr.mxu0 0.0
        %398 = vmatpush2.msra.mxu0 0.0
        %399 = vmatprep.subr.mxu0 0.0
        %400 = vmatpush2.msra.mxu0 0.0
        %401 = vmatprep.subr.mxu0 0.0
        %402 = vmatpush2.msra.mxu0 0.0
        %403 = vmatprep.subr.mxu0 0.0
        %404 = vmatpush2.msra.mxu0 0.0
        %405 = vmatprep.subr.mxu0 0.0
        %406 = vmatpush2.msra.mxu0 0.0
        %407 = vmatprep.subr.mxu0 0.0
        %408 = vmatpush2.msra.mxu0 0.0
        %409 = vmatprep.subr.mxu0 0.0
        %410 = vmatpush2.msra.mxu0 0.0
        %411 = vmatprep.subr.mxu0 0.0
        %412 = vmatpush2.msra.mxu0 0.0
        %413 = vmatprep.mubr.f32.mxu0 0.0
        %v414 = vand.u32 %v260, 4294901760
        %415 = vmatmul.mubr.f32.gmra.mxu0 %v414
        %v416 = vpop.f32.mrf.mxu0
        %v417 = vadd.f32 %v336, %v416
        %v418 = vpop.f32.mrf.mxu0
        %419 = vdwg.mxu0
        %420 = vmatprep.subr.mxu0 0.0
        %421 = vmatpush1.msra.mxu0 0.0
        %422 = vmatprep.subr.mxu0 0.0
        %423 = vmatpush1.msra.mxu0 0.0
        %424 = vmatprep.subr.mxu0 0.0
        %425 = vmatpush1.msra.mxu0 0.0
        %426 = vmatprep.subr.mxu0 0.0
        %427 = vmatpush1.msra.mxu0 0.0
        %428 = vmatprep.subr.mxu0 0.0
        %429 = vmatpush1.msra.mxu0 0.0
        %430 = vmatprep.subr.mxu0 0.0
        %431 = vmatpush1.msra.mxu0 0.0
        %432 = vmatprep.subr.mxu0 0.0
        %433 = vmatpush1.msra.mxu0 0.0
        %434 = vmatprep.subr.mxu0 0.0
        %435 = vmatpush1.msra.mxu0 0.0
        %436 = vmatprep.subr.mxu0 0.0
        %437 = vmatpush1.msra.mxu0 0.0
        %438 = vmatprep.subr.mxu0 0.0
        %439 = vmatpush1.msra.mxu0 0.0
        %440 = vmatprep.subr.mxu0 0.0
        %441 = vmatpush1.msra.mxu0 0.0
        %442 = vmatprep.subr.mxu0 0.0
        %443 = vmatpush1.msra.mxu0 0.0
        %444 = vmatprep.subr.mxu0 0.0
        %445 = vmatpush1.msra.mxu0 0.0
        %446 = vmatprep.subr.mxu0 0.0
        %447 = vmatpush1.msra.mxu0 0.0
        %448 = vmatprep.subr.mxu0 0.0
        %v449 = vand.u32 %v251, 4294901760
        %v450 = vsub.f32 %v251, %v449
        %451 = vmatpush1.msra.mxu0 %v450
        %452 = vmatprep.subr.mxu0 0.0
        %v453 = vand.u32 %v250, 4294901760
        %v454 = vsub.f32 %v250, %v453
        %455 = vmatpush1.msra.mxu0 %v454
        %456 = vmatprep.subr.mxu0 0.0
        %457 = vmatpush2.msra.mxu0 0.0
        %458 = vmatprep.subr.mxu0 0.0
        %459 = vmatpush2.msra.mxu0 0.0
        %460 = vmatprep.subr.mxu0 0.0
        %461 = vmatpush2.msra.mxu0 0.0
        %462 = vmatprep.subr.mxu0 0.0
        %463 = vmatpush2.msra.mxu0 0.0
        %464 = vmatprep.subr.mxu0 0.0
        %465 = vmatpush2.msra.mxu0 0.0
        %466 = vmatprep.subr.mxu0 0.0
        %467 = vmatpush2.msra.mxu0 0.0
        %468 = vmatprep.subr.mxu0 0.0
        %469 = vmatpush2.msra.mxu0 0.0
        %470 = vmatprep.subr.mxu0 0.0
        %471 = vmatpush2.msra.mxu0 0.0
        %472 = vmatprep.subr.mxu0 0.0
        %473 = vmatpush2.msra.mxu0 0.0
        %474 = vmatprep.subr.mxu0 0.0
        %475 = vmatpush2.msra.mxu0 0.0
        %476 = vmatprep.subr.mxu0 0.0
        %477 = vmatpush2.msra.mxu0 0.0
        %478 = vmatprep.subr.mxu0 0.0
        %479 = vmatpush2.msra.mxu0 0.0
        %480 = vmatprep.subr.mxu0 0.0
        %481 = vmatpush2.msra.mxu0 0.0
        %482 = vmatprep.subr.mxu0 0.0
        %483 = vmatpush2.msra.mxu0 0.0
        %484 = vmatprep.subr.mxu0 0.0
        %485 = vmatpush2.msra.mxu0 0.0
        %486 = vmatprep.subr.mxu0 0.0
        %487 = vmatpush2.msra.mxu0 0.0
        %488 = vmatprep.mubr.f32.mxu0 0.0
        %v489 = vand.u32 %v260, 4294901760
        %v490 = vsub.f32 %v260, %v489
        %491 = vmatmul.mubr.f32.gmra.mxu0 %v490
        %v492 = vpop.f32.mrf.mxu0
        %v493 = vadd.f32 %v417, %v492
        %v494 = vpop.f32.mrf.mxu0
        %495 = vdwg.mxu0
        %496 = vmatprep.subr.mxu0 0.0
        %497 = vmatpush1.msra.mxu0 0.0
        %498 = vmatprep.subr.mxu0 0.0
        %499 = vmatpush1.msra.mxu0 0.0
        %500 = vmatprep.subr.mxu0 0.0
        %501 = vmatpush1.msra.mxu0 0.0
        %502 = vmatprep.subr.mxu0 0.0
        %503 = vmatpush1.msra.mxu0 0.0
        %504 = vmatprep.subr.mxu0 0.0
        %505 = vmatpush1.msra.mxu0 0.0
        %506 = vmatprep.subr.mxu0 0.0
        %507 = vmatpush1.msra.mxu0 0.0
        %508 = vmatprep.subr.mxu0 0.0
        %509 = vmatpush1.msra.mxu0 0.0
        %510 = vmatprep.subr.mxu0 0.0
        %511 = vmatpush1.msra.mxu0 0.0
        %512 = vmatprep.subr.mxu0 0.0
        %513 = vmatpush1.msra.mxu0 0.0
        %514 = vmatprep.subr.mxu0 0.0
        %515 = vmatpush1.msra.mxu0 0.0
        %516 = vmatprep.subr.mxu0 0.0
        %517 = vmatpush1.msra.mxu0 0.0
        %518 = vmatprep.subr.mxu0 0.0
        %519 = vmatpush1.msra.mxu0 0.0
        %520 = vmatprep.subr.mxu0 0.0
        %521 = vmatpush1.msra.mxu0 0.0
        %522 = vmatprep.subr.mxu0 0.0
        %523 = vmatpush1.msra.mxu0 0.0
        %524 = vmatprep.subr.mxu0 0.0
        %v525 = vand.u32 %v251, 4294901760
        %526 = vmatpush1.msra.mxu0 %v525
        %527 = vmatprep.subr.mxu0 0.0
        %v528 = vand.u32 %v250, 4294901760
        %529 = vmatpush1.msra.mxu0 %v528
        %530 = vmatprep.subr.mxu0 0.0
        %531 = vmatpush2.msra.mxu0 0.0
        %532 = vmatprep.subr.mxu0 0.0
        %533 = vmatpush2.msra.mxu0 0.0
        %534 = vmatprep.subr.mxu0 0.0
        %535 = vmatpush2.msra.mxu0 0.0
        %536 = vmatprep.subr.mxu0 0.0
        %537 = vmatpush2.msra.mxu0 0.0
        %538 = vmatprep.subr.mxu0 0.0
        %539 = vmatpush2.msra.mxu0 0.0
        %540 = vmatprep.subr.mxu0 0.0
        %541 = vmatpush2.msra.mxu0 0.0
        %542 = vmatprep.subr.mxu0 0.0
        %543 = vmatpush2.msra.mxu0 0.0
        %544 = vmatprep.subr.mxu0 0.0
        %545 = vmatpush2.msra.mxu0 0.0
        %546 = vmatprep.subr.mxu0 0.0
        %547 = vmatpush2.msra.mxu0 0.0
        %548 = vmatprep.subr.mxu0 0.0
        %549 = vmatpush2.msra.mxu0 0.0
        %550 = vmatprep.subr.mxu0 0.0
        %551 = vmatpush2.msra.mxu0 0.0
        %552 = vmatprep.subr.mxu0 0.0
        %553 = vmatpush2.msra.mxu0 0.0
        %554 = vmatprep.subr.mxu0 0.0
        %555 = vmatpush2.msra.mxu0 0.0
        %556 = vmatprep.subr.mxu0 0.0
        %557 = vmatpush2.msra.mxu0 0.0
        %558 = vmatprep.subr.mxu0 0.0
        %559 = vmatpush2.msra.mxu0 0.0
        %560 = vmatprep.subr.mxu0 0.0
        %561 = vmatpush2.msra.mxu0 0.0
        %562 = vmatprep.mubr.f32.mxu0 0.0
        %v563 = vand.u32 %v260, 4294901760
        %v564 = vsub.f32 %v260, %v563
        %v565 = vand.u32 %v564, 4294901760
        %566 = vmatmul.mubr.f32.gmra.mxu0 %v565
        %v567 = vpop.f32.mrf.mxu0
        %v568 = vadd.f32 %v493, %v567
        %v569 = vpop.f32.mrf.mxu0
        %570 = vdwg.mxu0
        %571 = vmatprep.subr.mxu0 0.0
        %572 = vmatpush1.msra.mxu0 0.0
        %573 = vmatprep.subr.mxu0 0.0
        %574 = vmatpush1.msra.mxu0 0.0
        %575 = vmatprep.subr.mxu0 0.0
        %576 = vmatpush1.msra.mxu0 0.0
        %577 = vmatprep.subr.mxu0 0.0
        %578 = vmatpush1.msra.mxu0 0.0
        %579 = vmatprep.subr.mxu0 0.0
        %580 = vmatpush1.msra.mxu0 0.0
        %581 = vmatprep.subr.mxu0 0.0
        %582 = vmatpush1.msra.mxu0 0.0
        %583 = vmatprep.subr.mxu0 0.0
        %584 = vmatpush1.msra.mxu0 0.0
        %585 = vmatprep.subr.mxu0 0.0
        %586 = vmatpush1.msra.mxu0 0.0
        %587 = vmatprep.subr.mxu0 0.0
        %588 = vmatpush1.msra.mxu0 0.0
        %589 = vmatprep.subr.mxu0 0.0
        %590 = vmatpush1.msra.mxu0 0.0
        %591 = vmatprep.subr.mxu0 0.0
        %592 = vmatpush1.msra.mxu0 0.0
        %593 = vmatprep.subr.mxu0 0.0
        %594 = vmatpush1.msra.mxu0 0.0
        %595 = vmatprep.subr.mxu0 0.0
        %596 = vmatpush1.msra.mxu0 0.0
        %597 = vmatprep.subr.mxu0 0.0
        %598 = vmatpush1.msra.mxu0 0.0
        %599 = vmatprep.subr.mxu0 0.0
        %v600 = vand.u32 %v251, 4294901760
        %v601 = vsub.f32 %v251, %v600
        %v602 = vand.u32 %v601, 4294901760
        %603 = vmatpush1.msra.mxu0 %v602
        %604 = vmatprep.subr.mxu0 0.0
        %v605 = vand.u32 %v250, 4294901760
        %v606 = vsub.f32 %v250, %v605
        %v607 = vand.u32 %v606, 4294901760
        %608 = vmatpush1.msra.mxu0 %v607
        %609 = vmatprep.subr.mxu0 0.0
        %610 = vmatpush2.msra.mxu0 0.0
        %611 = vmatprep.subr.mxu0 0.0
        %612 = vmatpush2.msra.mxu0 0.0
        %613 = vmatprep.subr.mxu0 0.0
        %614 = vmatpush2.msra.mxu0 0.0
        %615 = vmatprep.subr.mxu0 0.0
        %616 = vmatpush2.msra.mxu0 0.0
        %617 = vmatprep.subr.mxu0 0.0
        %618 = vmatpush2.msra.mxu0 0.0
        %619 = vmatprep.subr.mxu0 0.0
        %620 = vmatpush2.msra.mxu0 0.0
        %621 = vmatprep.subr.mxu0 0.0
        %622 = vmatpush2.msra.mxu0 0.0
        %623 = vmatprep.subr.mxu0 0.0
        %624 = vmatpush2.msra.mxu0 0.0
        %625 = vmatprep.subr.mxu0 0.0
        %626 = vmatpush2.msra.mxu0 0.0
        %627 = vmatprep.subr.mxu0 0.0
        %628 = vmatpush2.msra.mxu0 0.0
        %629 = vmatprep.subr.mxu0 0.0
        %630 = vmatpush2.msra.mxu0 0.0
        %631 = vmatprep.subr.mxu0 0.0
        %632 = vmatpush2.msra.mxu0 0.0
        %633 = vmatprep.subr.mxu0 0.0
        %634 = vmatpush2.msra.mxu0 0.0
        %635 = vmatprep.subr.mxu0 0.0
        %636 = vmatpush2.msra.mxu0 0.0
        %637 = vmatprep.subr.mxu0 0.0
        %638 = vmatpush2.msra.mxu0 0.0
        %639 = vmatprep.subr.mxu0 0.0
        %640 = vmatpush2.msra.mxu0 0.0
        %641 = vmatprep.mubr.f32.mxu0 0.0
        %v642 = vand.u32 %v260, 4294901760
        %643 = vmatmul.mubr.f32.gmra.mxu0 %v642
        %v644 = vpop.f32.mrf.mxu0
        %v645 = vadd.f32 %v568, %v644
        %v646 = vpop.f32.mrf.mxu0
        %647 = vdwg.mxu0
        %648 = vmatprep.subr.mxu0 0.0
        %649 = vmatpush1.msra.mxu0 0.0
        %650 = vmatprep.subr.mxu0 0.0
        %651 = vmatpush1.msra.mxu0 0.0
        %652 = vmatprep.subr.mxu0 0.0
        %653 = vmatpush1.msra.mxu0 0.0
        %654 = vmatprep.subr.mxu0 0.0
        %655 = vmatpush1.msra.mxu0 0.0
        %656 = vmatprep.subr.mxu0 0.0
        %657 = vmatpush1.msra.mxu0 0.0
        %658 = vmatprep.subr.mxu0 0.0
        %659 = vmatpush1.msra.mxu0 0.0
        %660 = vmatprep.subr.mxu0 0.0
        %661 = vmatpush1.msra.mxu0 0.0
        %662 = vmatprep.subr.mxu0 0.0
        %663 = vmatpush1.msra.mxu0 0.0
        %664 = vmatprep.subr.mxu0 0.0
        %665 = vmatpush1.msra.mxu0 0.0
        %666 = vmatprep.subr.mxu0 0.0
        %667 = vmatpush1.msra.mxu0 0.0
        %668 = vmatprep.subr.mxu0 0.0
        %669 = vmatpush1.msra.mxu0 0.0
        %670 = vmatprep.subr.mxu0 0.0
        %671 = vmatpush1.msra.mxu0 0.0
        %672 = vmatprep.subr.mxu0 0.0
        %673 = vmatpush1.msra.mxu0 0.0
        %674 = vmatprep.subr.mxu0 0.0
        %675 = vmatpush1.msra.mxu0 0.0
        %676 = vmatprep.subr.mxu0 0.0
        %v677 = vand.u32 %v251, 4294901760
        %678 = vmatpush1.msra.mxu0 %v677
        %679 = vmatprep.subr.mxu0 0.0
        %v680 = vand.u32 %v250, 4294901760
        %681 = vmatpush1.msra.mxu0 %v680
        %682 = vmatprep.subr.mxu0 0.0
        %683 = vmatpush2.msra.mxu0 0.0
        %684 = vmatprep.subr.mxu0 0.0
        %685 = vmatpush2.msra.mxu0 0.0
        %686 = vmatprep.subr.mxu0 0.0
        %687 = vmatpush2.msra.mxu0 0.0
        %688 = vmatprep.subr.mxu0 0.0
        %689 = vmatpush2.msra.mxu0 0.0
        %690 = vmatprep.subr.mxu0 0.0
        %691 = vmatpush2.msra.mxu0 0.0
        %692 = vmatprep.subr.mxu0 0.0
        %693 = vmatpush2.msra.mxu0 0.0
        %694 = vmatprep.subr.mxu0 0.0
        %695 = vmatpush2.msra.mxu0 0.0
        %696 = vmatprep.subr.mxu0 0.0
        %697 = vmatpush2.msra.mxu0 0.0
        %698 = vmatprep.subr.mxu0 0.0
        %699 = vmatpush2.msra.mxu0 0.0
        %700 = vmatprep.subr.mxu0 0.0
        %701 = vmatpush2.msra.mxu0 0.0
        %702 = vmatprep.subr.mxu0 0.0
        %703 = vmatpush2.msra.mxu0 0.0
        %704 = vmatprep.subr.mxu0 0.0
        %705 = vmatpush2.msra.mxu0 0.0
        %706 = vmatprep.subr.mxu0 0.0
        %707 = vmatpush2.msra.mxu0 0.0
        %708 = vmatprep.subr.mxu0 0.0
        %709 = vmatpush2.msra.mxu0 0.0
        %710 = vmatprep.subr.mxu0 0.0
        %711 = vmatpush2.msra.mxu0 0.0
        %712 = vmatprep.subr.mxu0 0.0
        %713 = vmatpush2.msra.mxu0 0.0
        %714 = vmatprep.mubr.f32.mxu0 0.0
        %v715 = vand.u32 %v260, 4294901760
        %716 = vmatmul.mubr.f32.gmra.mxu0 %v715
        %v717 = vpop.f32.mrf.mxu0
        %v718 = vadd.f32 %v645, %v717
        %v719 = vpop.f32.mrf.mxu0
        %720 = vdwg.mxu0
        %721 = vst [vmem:[%s240] sm:$0xff] %v718
        %s722 = sand.u32 %s131, 1
        %s723 = scalar_lea.sflag [#allocation4], %s722
        %s724 = sand.u32 %s131, 1
        %s725 = smul.addr %s724, 8
        %s726 = scalar_lea.vmem [#allocation5], %s725
        // Predicated region
        $region37: #{tpu_custom_call.1} parent=31 // pred_check
          %p727 = pneg %p141
        $region38: #{tpu_custom_call.1} parent=31 // pred_check_branch
          %729 = sbr.rel (%p727) target = $region40
        $region39: #{tpu_custom_call.1} parent=31 // pred_region
          %s731 = ssub.s32 128, 128
          %732 = vsyncadd %s723, %s731
          %s733 = sadd.s32 %s26, %s27
          %s734 = sadd.s32 %s733, %s25
          %s735 = smul.addr %s734, 128
          %s736 = scalar_lea.hbm %s3, %s735
          %s738 = sshll.u32 %s726, 4
          %s739 = int_to_ptr.vmem [resolvable:$true] %s738
          %741 = dma.vmem_to_hbm [thread:$0]  %s739, 128, %s736, %s723
        $region40: #{tpu_custom_call.1} parent=31 // pred_fallthru
          _
      $region32: #{tpu_custom_call.1} parent=5 // pred_fallthru
        _
      %p742 = scmp.le.s32.totalorder 2, %s15
      // Predicated region
      $region41: #{tpu_custom_call.1} parent=5 // pred_check
        %p743 = pneg %p742
      $region42: #{tpu_custom_call.1} parent=5 // pred_check_branch
        %745 = sbr.rel (%p743) target = $region44
      $region43: #{tpu_custom_call.1} parent=5 // pred_region
        %s746 = ssub.s32 %s15, 2
        // Predicated region
        $region45: #{tpu_custom_call.1} parent=43 // pred_check
          %p747 = pneg %p147
        $region46: #{tpu_custom_call.1} parent=43 // pred_check_branch
          %749 = sbr.rel (%p747) target = $region48
        $region47: #{tpu_custom_call.1} parent=43 // pred_region
          %s750 = sand.u32 %s132, 1
          %s751 = scalar_lea.sflag [#allocation4], %s750
          %s752 = sand.u32 %s132, 1
          %s753 = smul.addr %s752, 8
          %s754 = scalar_lea.vmem [#allocation5], %s753
          %755 = dma.done %s751, 128
        $region48: #{tpu_custom_call.1} parent=43 // pred_fallthru
          _
      $region44: #{tpu_custom_call.1} parent=5 // pred_fallthru
        _
    $region6: #{tpu_custom_call.1} parent=1 // loop_footer
      %s19 = sadd.s32 1, %s15
    $region7: #{tpu_custom_call.1} parent=1 // loop_footer_branch
      %14 = sbr.rel target = $region3
    $region8: #{tpu_custom_call.1} parent=1 // loop_exit
      _
    %756 = vsyncpa [#allocation3], 1
    %s757 = scalar_lea.sflag [#allocation3], 1
    %758 = vsyncpa %s757, 1
    %759 = vsyncpa [#allocation4], 1
    %s760 = scalar_lea.sflag [#allocation4], 1
    %761 = vsyncpa %s760, 1

</llo_original>
